<compile_context>
chip_gen: v6e
topology: v6e:2x2x1
jax: 0.10.0
libtpu: 0.0.40
codegen_flags: <defaults>
</compile_context>

<pallas_src>
import functools
import math

import jax
import jax.numpy as jnp
import numpy as np
from jax.experimental import pallas as pl
from jax.experimental.pallas import tpu as pltpu

EPSILON = 1e-8


# ---------------------------------------------------------------------------
# kernel
# ---------------------------------------------------------------------------
def _loss_sums_kernel(logits_ref, targets_ref,
                      ce_ref, inter_ref, psum_ref, tsum_ref,
                      *, t_inner, num_t_pp, hw_true, needs_mask):
    # logits_ref: (1, C, T) bf16/f32, targets_ref: (1, 1, T) int8/int32
    # outputs: (1, 1, C, 128) f32 per-lane accumulators resident across the HW axis.
    _, C, T = logits_ref.shape
    h = pl.program_id(2)

    @pl.when(h == 0)
    def _():
        ce_ref[...] = jnp.zeros_like(ce_ref)
        inter_ref[...] = jnp.zeros_like(inter_ref)
        psum_ref[...] = jnp.zeros_like(psum_ref)
        tsum_ref[...] = jnp.zeros_like(tsum_ref)

    class_ids = jax.lax.broadcasted_iota(jnp.int32, (C, 1), 0)   # (C, 1)
    groups = t_inner // 128
    num_inner = T // t_inner

    if needs_mask:
        p = pl.program_id(1)
        tile_base = (p * num_t_pp + h) * T
        lane_ids = jax.lax.broadcasted_iota(jnp.int32, (1, t_inner), 1)

    def body(j, carry):
        ce_acc, inter_acc, psum_acc, tsum_acc = carry
        off = pl.multiple_of(j * t_inner, 128)
        logits = logits_ref[0, :, pl.ds(off, t_inner)].astype(jnp.float32)  # (C, ti)
        tgt = targets_ref[0, :, pl.ds(off, t_inner)].astype(jnp.int32)      # (1, ti)

        # numerically stable softmax / log-softmax over the class (sublane) axis
        m = jnp.max(logits, axis=0, keepdims=True)                 # (1, ti)
        e = jnp.exp(logits - m)                                    # (C, ti)
        s = jnp.sum(e, axis=0, keepdims=True)                      # (1, ti)
        inv_s = pl.reciprocal(s, approx=True)                      # EUP, off the VALU
        inv_s = inv_s * (2.0 - s * inv_s)                          # one Newton step
        probs = e * inv_s                                          # (C, ti)
        logsumexp = m + jnp.log(s)                                 # (1, ti)

        # boolean class mask instead of materialized one-hot / (C,ti) int32 iota
        mask = class_ids == tgt                                    # (C, ti) bool
        mask_f = mask.astype(jnp.float32)
        logit_t = jnp.sum(jnp.where(mask, logits, 0.0), axis=0, keepdims=True)
        ce_pix = logsumexp - logit_t                               # (1, ti)

        if needs_mask:
            valid = ((tile_base + off + lane_ids) < hw_true).astype(jnp.float32)
            mask_f = mask_f * valid
            probs = probs * valid
            ce_pix = ce_pix * valid

        ce_cls = ce_pix * mask_f      # CE attributed to the target class (for weights)
        inter_pix = probs * mask_f

        # per-lane accumulation over aligned 128-lane chunks: lane-dense outputs,
        # no cross-lane XLU reduction in-kernel (final reduction in JAX epilogue).
        for g in range(groups):
            sl = slice(g * 128, (g + 1) * 128)
            ce_acc = ce_acc + ce_cls[:, sl]
            inter_acc = inter_acc + inter_pix[:, sl]
            psum_acc = psum_acc + probs[:, sl]
            tsum_acc = tsum_acc + mask_f[:, sl]
        return ce_acc, inter_acc, psum_acc, tsum_acc

    zero = jnp.zeros((C, 128), jnp.float32)
    ce_t, inter_t, psum_t, tsum_t = jax.lax.fori_loop(
        0, num_inner, body, (zero, zero, zero, zero))

    ce_ref[0, 0] += ce_t
    inter_ref[0, 0] += inter_t
    psum_ref[0, 0] += psum_t
    tsum_ref[0, 0] += tsum_t


# ---------------------------------------------------------------------------
# tiling helpers
# ---------------------------------------------------------------------------
def _round_up(x, m):
    return ((x + m - 1) // m) * m


def _vmem_capacity_bytes():
    try:
        return int(pltpu.get_tpu_info().vmem_capacity_bytes)
    except Exception:
        return 64 << 20   # conservative (v7x per-core VMEM)


def _pick_tiles(hw, c, in_isz, tgt_isz, vmem_cap):
    """Pick (T, t_inner): DMA tile T (multiple of t_inner) and compute chunk t_inner."""
    t_inner = min(2048, _round_up(hw, 128))
    bpp = c * in_isz + tgt_isz
    tile_budget = max(vmem_cap // 16, bpp * t_inner)        # ~8 MiB v5e/v6e, ~4 MiB v7x
    t_cap = max(t_inner, (tile_budget // bpp) // t_inner * t_inner)
    hw_cap = _round_up(hw, t_inner)
    if t_cap >= hw_cap:
        return hw_cap, t_inner                               # whole (padded) image/tile
    # prefer a tile that divides HW exactly (no padding), close to the cap
    t = t_cap
    while t >= t_inner:
        if hw % t == 0:
            return t, t_inner
        t -= t_inner
    return t_cap, t_inner                                    # fall back to padding


# ---------------------------------------------------------------------------
# pallas_call wrapper producing the partial sums
# ---------------------------------------------------------------------------
def _loss_partial_sums(logits, targets, *, hw_true, spatial_splits, tile_hw=None):
    """logits: (N, C, HW) bf16/f32, targets: (N, 1, HW) int8/int32."""
    N, C, HW = logits.shape
    assert C <= 128, "per-lane accumulators assume C <= 128"
    P = int(spatial_splits)
    in_isz = logits.dtype.itemsize
    tgt_isz = targets.dtype.itemsize
    vmem_cap = _vmem_capacity_bytes()

    if tile_hw is not None:
        T = int(tile_hw)
        assert T % 128 == 0, "tile_hw must be a multiple of 128"
        t_inner = math.gcd(T, 2048)
    else:
        T, t_inner = _pick_tiles(hw_true, C, in_isz, tgt_isz, vmem_cap)

    total_t = -(-hw_true // T)                 # ceil
    total_t = _round_up(total_t, P)
    hw_pad = total_t * T
    num_t_pp = total_t // P
    needs_mask = hw_pad != hw_true

    if hw_pad != HW:
        pad = hw_pad - HW
        logits = jnp.pad(logits, ((0, 0), (0, 0), (0, pad)))
        targets = jnp.pad(targets, ((0, 0), (0, 0), (0, pad)))

    kernel = functools.partial(
        _loss_sums_kernel, t_inner=t_inner, num_t_pp=num_t_pp,
        hw_true=hw_true, needs_mask=needs_mask)

    def _in_map(n, p, h):
        return (n, 0, p * num_t_pp + h)

    def _acc_map(n, p, h):
        return (n, p, 0, 0)

    acc_shape = jax.ShapeDtypeStruct((N, P, C, 128), jnp.float32)
    acc_spec = pl.BlockSpec((1, 1, C, 128), _acc_map)

    tile_bytes = T * (C * in_isz + tgt_isz)
    vmem_limit = int(min(max(32 << 20, 2 * tile_bytes + (16 << 20)),
                         (vmem_cap * 3) // 4))

    flops = int(8 * N * C * hw_true)
    transcendentals = int(N * hw_true * (C + 2))
    bytes_accessed = int(N * C * hw_pad * in_isz + N * hw_pad * tgt_isz
                         + 4 * N * P * C * 128 * 4)

    return pl.pallas_call(
        kernel,
        out_shape=(acc_shape, acc_shape, acc_shape, acc_shape),
        grid=(N, P, num_t_pp),
        in_specs=[
            pl.BlockSpec((1, C, T), _in_map),
            pl.BlockSpec((1, 1, T), _in_map),
        ],
        out_specs=[acc_spec, acc_spec, acc_spec, acc_spec],
        compiler_params=pltpu.CompilerParams(
            dimension_semantics=("parallel", "parallel", "arbitrary"),
            vmem_limit_bytes=vmem_limit),
        cost_estimate=pl.CostEstimate(
            flops=flops, transcendentals=transcendentals,
            bytes_accessed=bytes_accessed),
    )(logits, targets)


# ---------------------------------------------------------------------------
# public loss (matches CombinedLoss.forward)
# ---------------------------------------------------------------------------
@functools.partial(
    jax.jit,
    static_argnames=("alpha", "epsilon", "region_weighting", "tile_hw",
                     "spatial_splits"))
def combined_loss(preds, targets, *, class_weights=None, alpha=0.5,
                  epsilon=EPSILON, region_weighting=True, tile_hw=None,
                  spatial_splits=None):
    """preds: (N, C, H, W) float logits (NCHW), targets: (N, H, W) int class indices."""
    N, C, H, W = preds.shape
    HW = H * W
    if preds.dtype not in (jnp.dtype(jnp.bfloat16), jnp.dtype(jnp.float32)):
        preds = preds.astype(jnp.float32)
    logits = preds.reshape(N, C, HW)                          # bf16 stays bf16 in HBM
    tgt_dtype = jnp.int8 if C <= 127 else jnp.int32           # shrink HBM target stream
    tgt = targets.reshape(N, 1, HW).astype(tgt_dtype)

    # spatial split: use the second TensorCore (v7x) when the batch axis is too small
    P = spatial_splits if spatial_splits is not None else (2 if N == 1 else 1)

    ce_pc, inter, psum, tsum = _loss_partial_sums(
        logits, tgt, hw_true=HW, spatial_splits=P, tile_hw=tile_hw)

    # epilogue: tiny (N, P, C, 128) reductions in plain JAX
    ce_per_class = jnp.sum(ce_pc, axis=(1, 3))                # (N, C)
    inter = jnp.sum(inter, axis=(1, 3))                       # (N, C)
    psum = jnp.sum(psum, axis=(1, 3))                         # (N, C)
    tsum = jnp.sum(tsum, axis=(1, 3))                         # (N, C)

    if class_weights is None:
        ce_loss = jnp.sum(ce_per_class) / (N * HW)
    else:
        w = class_weights.astype(jnp.float32)
        # PyTorch weighted CE: sum(w[target] * ce_pix) / sum(w[target])
        ce_loss = jnp.sum(ce_per_class * w[None, :]) / jnp.sum(tsum * w[None, :])

    dice_score = (2.0 * inter + epsilon) / (psum + tsum + epsilon)
    dice_loss = 1.0 - dice_score                              # (N, C)
    if region_weighting:
        region_weight = 1.0 + tsum / (jnp.max(tsum) + epsilon)
        dice_loss = dice_loss * region_weight
    if class_weights is not None:
        dice_loss = dice_loss * class_weights.astype(jnp.float32)[None, :]
    total_dice_loss = jnp.mean(dice_loss)

    return alpha * ce_loss + (1.0 - alpha) * total_dice_loss


# ---------------------------------------------------------------------------
# pure-JAX reference (replicates the PyTorch forward)
# ---------------------------------------------------------------------------
def _reference_loss(preds, targets, alpha=0.5, epsilon=EPSILON, class_weights=None):
    N, C, H, W = preds.shape
    preds = preds.astype(jnp.float32)
    logp = jax.nn.log_softmax(preds, axis=1)
    oh = jax.nn.one_hot(targets, C, axis=1, dtype=jnp.float32)       # (N,C,H,W)
    ce_pix = -jnp.sum(logp * oh, axis=1)                             # (N,H,W)
    if class_weights is None:
        ce = jnp.mean(ce_pix)
    else:
        w_pix = class_weights[targets]
        ce = jnp.sum(w_pix * ce_pix) / jnp.sum(w_pix)
    probs = jax.nn.softmax(preds, axis=1)
    inter = jnp.sum(probs * oh, axis=(2, 3))
    psum = jnp.sum(probs, axis=(2, 3))
    tsum = jnp.sum(oh, axis=(2, 3))
    dice = 1.0 - (2.0 * inter + epsilon) / (psum + tsum + epsilon)
    rw = 1.0 + tsum / (jnp.max(tsum) + epsilon)
    dice = dice * rw
    if class_weights is not None:
        dice = dice * class_weights[None, :]
    total_dice = jnp.mean(dice)
    return alpha * ce + (1 - alpha) * total_dice


if __name__ == "__main__":
    key = jax.random.PRNGKey(0)
    k1, k2 = jax.random.split(key)
    N, C, H, W = 2, 4, 16, 16
    preds = jax.random.normal(k1, (N, C, H, W), dtype=jnp.float32)
    targets = jax.random.randint(k2, (N, H, W), 0, C, dtype=jnp.int32)

    # f32, auto tile (single spatial tile at this small shape)
    ref = jax.block_until_ready(_reference_loss(preds, targets))
    loss = jax.block_until_ready(combined_loss(preds, targets))
    np.testing.assert_allclose(np.asarray(loss), np.asarray(ref), rtol=1e-4, atol=1e-5)

    # forced 128-lane tiles -> multi-tile accumulation path
    loss_tiled = jax.block_until_ready(combined_loss(preds, targets, tile_hw=128))
    np.testing.assert_allclose(np.asarray(loss_tiled), np.asarray(ref),
                               rtol=1e-4, atol=1e-5)

    # N == 1 -> spatial split P=2 (second parallel grid axis) + padded-lane masking
    ref_1 = jax.block_until_ready(_reference_loss(preds[:1], targets[:1]))
    loss_1 = jax.block_until_ready(combined_loss(preds[:1], targets[:1]))
    np.testing.assert_allclose(np.asarray(loss_1), np.asarray(ref_1),
                               rtol=1e-4, atol=1e-5)

    # class-weighted path (weighted CE + weighted dice)
    w = jnp.array([1.0, 2.0, 0.5, 1.5], dtype=jnp.float32)
    ref_w = jax.block_until_ready(_reference_loss(preds, targets, class_weights=w))
    loss_w = jax.block_until_ready(combined_loss(preds, targets, class_weights=w))
    np.testing.assert_allclose(np.asarray(loss_w), np.asarray(ref_w),
                               rtol=1e-4, atol=1e-5)

    # bf16 logits path: kernel reads bf16 + int8 targets from HBM, upcasts per chunk
    preds_bf16 = preds.astype(jnp.bfloat16)
    ref_bf16 = jax.block_until_ready(
        _reference_loss(preds_bf16.astype(jnp.float32), targets))
    loss_bf16 = jax.block_until_ready(
        combined_loss(preds_bf16, targets, tile_hw=128))
    np.testing.assert_allclose(np.asarray(loss_bf16), np.asarray(ref_bf16),
                               rtol=1e-3, atol=1e-3)

    print("KERNEL_OK")
</pallas_src>

<mosaic_0001>
module attributes {stable_mosaic.version = 11 : i64} {
  func.func @_loss_sums_kernel(%arg0: i32, %arg1: i32, %arg2: i32, %arg3: memref<1x4x256xf32, #tpu.memory_space<vmem>>, %arg4: memref<1x1x256xi8, #tpu.memory_space<vmem>>, %arg5: memref<1x1x4x128xf32, #tpu.memory_space<vmem>>, %arg6: memref<1x1x4x128xf32, #tpu.memory_space<vmem>>, %arg7: memref<1x1x4x128xf32, #tpu.memory_space<vmem>>, %arg8: memref<1x1x4x128xf32, #tpu.memory_space<vmem>>) attributes {dimension_semantics = [#tpu.dimension_semantics<parallel>, #tpu.dimension_semantics<parallel>, #tpu.dimension_semantics<arbitrary>], iteration_bounds = array<i64: 2, 1, 1>, scalar_prefetch = 0 : i64, scratch_operands = 0 : i64, tpu.core_type = #tpu.core_type<tc>, window_params = [{transform_indices = @transform_0, window_bounds = array<i64: 1, 4, 256>}, {transform_indices = @transform_1, window_bounds = array<i64: 1, 1, 256>}, {transform_indices = @transform_2, window_bounds = array<i64: 1, 1, 4, 128>}, {transform_indices = @transform_3, window_bounds = array<i64: 1, 1, 4, 128>}, {transform_indices = @transform_4, window_bounds = array<i64: 1, 1, 4, 128>}, {transform_indices = @transform_5, window_bounds = array<i64: 1, 1, 4, 128>}]} {
    %c0_i32 = arith.constant 0 : i32
    %0 = arith.cmpi eq, %arg2, %c0_i32 : i32
    %1 = arith.extui %0 : i1 to i32
    %c0_i32_0 = arith.constant 0 : i32
    %2 = arith.cmpi ne, %1, %c0_i32_0 : i32
    scf.if %2 {
      %cst_42 = arith.constant 0.000000e+00 : f32
      %83 = vector.broadcast %cst_42 : f32 to vector<1x1x4x128xf32>
      %c0_43 = arith.constant 0 : index
      %c0_44 = arith.constant 0 : index
      %c0_45 = arith.constant 0 : index
      %c0_46 = arith.constant 0 : index
      %84 = vector.load %arg5[%c0_43, %c0_44, %c0_45, %c0_46] : memref<1x1x4x128xf32, #tpu.memory_space<vmem>>, vector<1x1x4x128xf32>
      tpu.vector_store %arg5[%c0_43, %c0_44, %c0_45, %c0_46], %83 {strides = array<i32>} : memref<1x1x4x128xf32, #tpu.memory_space<vmem>>, vector<1x1x4x128xf32>,
      %cst_47 = arith.constant 0.000000e+00 : f32
      %85 = vector.broadcast %cst_47 : f32 to vector<1x1x4x128xf32>
      %c0_48 = arith.constant 0 : index
      %c0_49 = arith.constant 0 : index
      %c0_50 = arith.constant 0 : index
      %c0_51 = arith.constant 0 : index
      %86 = vector.load %arg6[%c0_48, %c0_49, %c0_50, %c0_51] : memref<1x1x4x128xf32, #tpu.memory_space<vmem>>, vector<1x1x4x128xf32>
      tpu.vector_store %arg6[%c0_48, %c0_49, %c0_50, %c0_51], %85 {strides = array<i32>} : memref<1x1x4x128xf32, #tpu.memory_space<vmem>>, vector<1x1x4x128xf32>,
      %cst_52 = arith.constant 0.000000e+00 : f32
      %87 = vector.broadcast %cst_52 : f32 to vector<1x1x4x128xf32>
      %c0_53 = arith.constant 0 : index
      %c0_54 = arith.constant 0 : index
      %c0_55 = arith.constant 0 : index
      %c0_56 = arith.constant 0 : index
      %88 = vector.load %arg7[%c0_53, %c0_54, %c0_55, %c0_56] : memref<1x1x4x128xf32, #tpu.memory_space<vmem>>, vector<1x1x4x128xf32>
      tpu.vector_store %arg7[%c0_53, %c0_54, %c0_55, %c0_56], %87 {strides = array<i32>} : memref<1x1x4x128xf32, #tpu.memory_space<vmem>>, vector<1x1x4x128xf32>,
      %cst_57 = arith.constant 0.000000e+00 : f32
      %89 = vector.broadcast %cst_57 : f32 to vector<1x1x4x128xf32>
      %c0_58 = arith.constant 0 : index
      %c0_59 = arith.constant 0 : index
      %c0_60 = arith.constant 0 : index
      %c0_61 = arith.constant 0 : index
      %90 = vector.load %arg8[%c0_58, %c0_59, %c0_60, %c0_61] : memref<1x1x4x128xf32, #tpu.memory_space<vmem>>, vector<1x1x4x128xf32>
      tpu.vector_store %arg8[%c0_58, %c0_59, %c0_60, %c0_61], %89 {strides = array<i32>} : memref<1x1x4x128xf32, #tpu.memory_space<vmem>>, vector<1x1x4x128xf32>,
    } else {
    }
    %3 = tpu.iota {dimensions = array<i32: 0>} : vector<4x1xi32>
    %cst = arith.constant 0.000000e+00 : f32
    %4 = vector.broadcast %cst : f32 to vector<4x128xf32>
    %c0_i32_1 = arith.constant 0 : i32
    %c256_i32 = arith.constant 256 : i32
    %5 = arith.muli %c0_i32_1, %c256_i32 : i32
    %6 = tpu.assume_multiple %5, 128 : i32
    %c0 = arith.constant 0 : index
    %c0_2 = arith.constant 0 : index
    %7 = arith.index_cast %6 : i32 to index
    %8 = vector.load %arg3[%c0, %c0_2, %7] : memref<1x4x256xf32, #tpu.memory_space<vmem>>, vector<1x4x256xf32>
    %9 = vector.shape_cast %8 : vector<1x4x256xf32> to vector<4x256xf32>
    %c0_3 = arith.constant 0 : index
    %c0_4 = arith.constant 0 : index
    %10 = arith.index_cast %6 : i32 to index
    %11 = vector.load %arg4[%c0_3, %c0_4, %10] : memref<1x1x256xi8, #tpu.memory_space<vmem>>, vector<1x1x256xi8>
    %12 = vector.shape_cast %11 : vector<1x1x256xi8> to vector<1x256xi8>
    %13 = arith.extsi %12 : vector<1x256xi8> to vector<1x256xi32>
    %cst_5 = arith.constant dense<0xFF800000> : vector<256xf32>
    %14 = vector.multi_reduction <maximumf>, %9, %cst_5 [0] : vector<4x256xf32> to vector<256xf32>
    %15 = vector.shape_cast %14 : vector<256xf32> to vector<1x256xf32>
    %16 = vector.broadcast %15 : vector<1x256xf32> to vector<4x256xf32>
    %17 = arith.subf %9, %16 : vector<4x256xf32>
    %18 = math.exp %17 : vector<4x256xf32>
    %cst_6 = arith.constant dense<0.000000e+00> : vector<256xf32>
    %19 = vector.multi_reduction <add>, %18, %cst_6 [0] : vector<4x256xf32> to vector<256xf32>
    %20 = vector.shape_cast %19 : vector<256xf32> to vector<1x256xf32>
    %21 = tpu.reciprocal %20 {approx = true} : vector<1x256xf32> -> vector<1x256xf32>
    %22 = arith.mulf %20, %21 : vector<1x256xf32>
    %cst_7 = arith.constant 2.000000e+00 : f32
    %23 = vector.broadcast %cst_7 : f32 to vector<1x256xf32>
    %24 = arith.subf %23, %22 : vector<1x256xf32>
    %25 = arith.mulf %21, %24 : vector<1x256xf32>
    %26 = vector.broadcast %25 : vector<1x256xf32> to vector<4x256xf32>
    %27 = arith.mulf %18, %26 : vector<4x256xf32>
    %28 = math.log %20 : vector<1x256xf32>
    %29 = arith.addf %15, %28 : vector<1x256xf32>
    %30 = vector.broadcast %3 : vector<4x1xi32> to vector<4x256xi32>
    %31 = vector.broadcast %13 : vector<1x256xi32> to vector<4x256xi32>
    %32 = arith.cmpi eq, %30, %31 : vector<4x256xi32>
    %33 = arith.extui %32 : vector<4x256xi1> to vector<4x256xi32>
    %34 = arith.sitofp %33 : vector<4x256xi32> to vector<4x256xf32>
    %cst_8 = arith.constant 0.000000e+00 : f32
    %35 = vector.broadcast %cst_8 : f32 to vector<4x256xf32>
    %36 = arith.select %32, %9, %35 : vector<4x256xi1>, vector<4x256xf32>
    %cst_9 = arith.constant dense<0.000000e+00> : vector<256xf32>
    %37 = vector.multi_reduction <add>, %36, %cst_9 [0] : vector<4x256xf32> to vector<256xf32>
    %38 = vector.shape_cast %37 : vector<256xf32> to vector<1x256xf32>
    %39 = arith.subf %29, %38 : vector<1x256xf32>
    %40 = vector.broadcast %39 : vector<1x256xf32> to vector<4x256xf32>
    %41 = arith.mulf %40, %34 : vector<4x256xf32>
    %42 = arith.mulf %27, %34 : vector<4x256xf32>
    %43 = vector.extract_strided_slice %41 {offsets = [0, 0], sizes = [4, 128], strides = [1, 1]} : vector<4x256xf32> to vector<4x128xf32>
    %44 = arith.addf %4, %43 : vector<4x128xf32>
    %45 = vector.extract_strided_slice %42 {offsets = [0, 0], sizes = [4, 128], strides = [1, 1]} : vector<4x256xf32> to vector<4x128xf32>
    %46 = arith.addf %4, %45 : vector<4x128xf32>
    %47 = vector.extract_strided_slice %27 {offsets = [0, 0], sizes = [4, 128], strides = [1, 1]} : vector<4x256xf32> to vector<4x128xf32>
    %48 = arith.addf %4, %47 : vector<4x128xf32>
    %49 = vector.extract_strided_slice %34 {offsets = [0, 0], sizes = [4, 128], strides = [1, 1]} : vector<4x256xf32> to vector<4x128xf32>
    %50 = arith.addf %4, %49 : vector<4x128xf32>
    %51 = vector.extract_strided_slice %41 {offsets = [0, 128], sizes = [4, 128], strides = [1, 1]} : vector<4x256xf32> to vector<4x128xf32>
    %52 = arith.addf %44, %51 : vector<4x128xf32>
    %53 = vector.extract_strided_slice %42 {offsets = [0, 128], sizes = [4, 128], strides = [1, 1]} : vector<4x256xf32> to vector<4x128xf32>
    %54 = arith.addf %46, %53 : vector<4x128xf32>
    %55 = vector.extract_strided_slice %27 {offsets = [0, 128], sizes = [4, 128], strides = [1, 1]} : vector<4x256xf32> to vector<4x128xf32>
    %56 = arith.addf %48, %55 : vector<4x128xf32>
    %57 = vector.extract_strided_slice %34 {offsets = [0, 128], sizes = [4, 128], strides = [1, 1]} : vector<4x256xf32> to vector<4x128xf32>
    %58 = arith.addf %50, %57 : vector<4x128xf32>
    %c1_i32 = arith.constant 1 : i32
    %c0_10 = arith.constant 0 : index
    %c0_11 = arith.constant 0 : index
    %c0_12 = arith.constant 0 : index
    %c0_13 = arith.constant 0 : index
    %59 = vector.load %arg5[%c0_10, %c0_11, %c0_12, %c0_13] : memref<1x1x4x128xf32, #tpu.memory_space<vmem>>, vector<1x1x4x128xf32>
    %60 = vector.shape_cast %59 : vector<1x1x4x128xf32> to vector<4x128xf32>
    %61 = arith.addf %60, %52 : vector<4x128xf32>
    %c0_14 = arith.constant 0 : index
    %c0_15 = arith.constant 0 : index
    %c0_16 = arith.constant 0 : index
    %c0_17 = arith.constant 0 : index
    %62 = vector.load %arg5[%c0_14, %c0_15, %c0_16, %c0_17] : memref<1x1x4x128xf32, #tpu.memory_space<vmem>>, vector<1x1x4x128xf32>
    %63 = vector.shape_cast %62 : vector<1x1x4x128xf32> to vector<4x128xf32>
    %64 = vector.shape_cast %61 : vector<4x128xf32> to vector<1x1x4x128xf32>
    tpu.vector_store %arg5[%c0_14, %c0_15, %c0_16, %c0_17], %64 {strides = array<i32>} : memref<1x1x4x128xf32, #tpu.memory_space<vmem>>, vector<1x1x4x128xf32>,
    %c0_18 = arith.constant 0 : index
    %c0_19 = arith.constant 0 : index
    %c0_20 = arith.constant 0 : index
    %c0_21 = arith.constant 0 : index
    %65 = vector.load %arg6[%c0_18, %c0_19, %c0_20, %c0_21] : memref<1x1x4x128xf32, #tpu.memory_space<vmem>>, vector<1x1x4x128xf32>
    %66 = vector.shape_cast %65 : vector<1x1x4x128xf32> to vector<4x128xf32>
    %67 = arith.addf %66, %54 : vector<4x128xf32>
    %c0_22 = arith.constant 0 : index
    %c0_23 = arith.constant 0 : index
    %c0_24 = arith.constant 0 : index
    %c0_25 = arith.constant 0 : index
    %68 = vector.load %arg6[%c0_22, %c0_23, %c0_24, %c0_25] : memref<1x1x4x128xf32, #tpu.memory_space<vmem>>, vector<1x1x4x128xf32>
    %69 = vector.shape_cast %68 : vector<1x1x4x128xf32> to vector<4x128xf32>
    %70 = vector.shape_cast %67 : vector<4x128xf32> to vector<1x1x4x128xf32>
    tpu.vector_store %arg6[%c0_22, %c0_23, %c0_24, %c0_25], %70 {strides = array<i32>} : memref<1x1x4x128xf32, #tpu.memory_space<vmem>>, vector<1x1x4x128xf32>,
    %c0_26 = arith.constant 0 : index
    %c0_27 = arith.constant 0 : index
    %c0_28 = arith.constant 0 : index
    %c0_29 = arith.constant 0 : index
    %71 = vector.load %arg7[%c0_26, %c0_27, %c0_28, %c0_29] : memref<1x1x4x128xf32, #tpu.memory_space<vmem>>, vector<1x1x4x128xf32>
    %72 = vector.shape_cast %71 : vector<1x1x4x128xf32> to vector<4x128xf32>
    %73 = arith.addf %72, %56 : vector<4x128xf32>
    %c0_30 = arith.constant 0 : index
    %c0_31 = arith.constant 0 : index
    %c0_32 = arith.constant 0 : index
    %c0_33 = arith.constant 0 : index
    %74 = vector.load %arg7[%c0_30, %c0_31, %c0_32, %c0_33] : memref<1x1x4x128xf32, #tpu.memory_space<vmem>>, vector<1x1x4x128xf32>
    %75 = vector.shape_cast %74 : vector<1x1x4x128xf32> to vector<4x128xf32>
    %76 = vector.shape_cast %73 : vector<4x128xf32> to vector<1x1x4x128xf32>
    tpu.vector_store %arg7[%c0_30, %c0_31, %c0_32, %c0_33], %76 {strides = array<i32>} : memref<1x1x4x128xf32, #tpu.memory_space<vmem>>, vector<1x1x4x128xf32>,
    %c0_34 = arith.constant 0 : index
    %c0_35 = arith.constant 0 : index
    %c0_36 = arith.constant 0 : index
    %c0_37 = arith.constant 0 : index
    %77 = vector.load %arg8[%c0_34, %c0_35, %c0_36, %c0_37] : memref<1x1x4x128xf32, #tpu.memory_space<vmem>>, vector<1x1x4x128xf32>
    %78 = vector.shape_cast %77 : vector<1x1x4x128xf32> to vector<4x128xf32>
    %79 = arith.addf %78, %58 : vector<4x128xf32>
    %c0_38 = arith.constant 0 : index
    %c0_39 = arith.constant 0 : index
    %c0_40 = arith.constant 0 : index
    %c0_41 = arith.constant 0 : index
    %80 = vector.load %arg8[%c0_38, %c0_39, %c0_40, %c0_41] : memref<1x1x4x128xf32, #tpu.memory_space<vmem>>, vector<1x1x4x128xf32>
    %81 = vector.shape_cast %80 : vector<1x1x4x128xf32> to vector<4x128xf32>
    %82 = vector.shape_cast %79 : vector<4x128xf32> to vector<1x1x4x128xf32>
    tpu.vector_store %arg8[%c0_38, %c0_39, %c0_40, %c0_41], %82 {strides = array<i32>} : memref<1x1x4x128xf32, #tpu.memory_space<vmem>>, vector<1x1x4x128xf32>,
    return
  }
  func.func @transform_0(%arg0: i32, %arg1: i32, %arg2: i32) -> (i32, i32, i32) {
    %c1_i32 = arith.constant 1 : i32
    %0 = arith.muli %arg1, %c1_i32 : i32
    %1 = arith.addi %0, %arg2 : i32
    %c0_i32 = arith.constant 0 : i32
    %c0_i32_0 = arith.constant 0 : i32
    return %arg0, %c0_i32, %1 : i32, i32, i32
  }
  func.func @transform_1(%arg0: i32, %arg1: i32, %arg2: i32) -> (i32, i32, i32) {
    %c1_i32 = arith.constant 1 : i32
    %0 = arith.muli %arg1, %c1_i32 : i32
    %1 = arith.addi %0, %arg2 : i32
    %c0_i32 = arith.constant 0 : i32
    %c0_i32_0 = arith.constant 0 : i32
    return %arg0, %c0_i32, %1 : i32, i32, i32
  }
  func.func @transform_2(%arg0: i32, %arg1: i32, %arg2: i32) -> (i32, i32, i32, i32) {
    %c0_i32 = arith.constant 0 : i32
    %c0_i32_0 = arith.constant 0 : i32
    %c0_i32_1 = arith.constant 0 : i32
    return %arg0, %arg1, %c0_i32, %c0_i32_0 : i32, i32, i32, i32
  }
  func.func @transform_3(%arg0: i32, %arg1: i32, %arg2: i32) -> (i32, i32, i32, i32) {
    %c0_i32 = arith.constant 0 : i32
    %c0_i32_0 = arith.constant 0 : i32
    %c0_i32_1 = arith.constant 0 : i32
    return %arg0, %arg1, %c0_i32, %c0_i32_0 : i32, i32, i32, i32
  }
  func.func @transform_4(%arg0: i32, %arg1: i32, %arg2: i32) -> (i32, i32, i32, i32) {
    %c0_i32 = arith.constant 0 : i32
    %c0_i32_0 = arith.constant 0 : i32
    %c0_i32_1 = arith.constant 0 : i32
    return %arg0, %arg1, %c0_i32, %c0_i32_0 : i32, i32, i32, i32
  }
  func.func @transform_5(%arg0: i32, %arg1: i32, %arg2: i32) -> (i32, i32, i32, i32) {
    %c0_i32 = arith.constant 0 : i32
    %c0_i32_0 = arith.constant 0 : i32
    %c0_i32_1 = arith.constant 0 : i32
    return %arg0, %arg1, %c0_i32, %c0_i32_0 : i32, i32, i32, i32
  }
}

</mosaic_0001>

<llo_original>
// kernel: combined_loss.1
$region0: #{combined_loss.1}
  #allocation0 [shape = 'u32[]', space=smem, size = 0x4, offset = 0x4, fixed_abs, tag = 'smem constant byte address 0x4 - core index']
  #allocation1 [shape = 'u32[144,128]{1,0:T(1,128)}', space=vmem, size = 0x12000, scoped, tag = 'internal scratch']
  %s0 = inlined_call_operand.vmem [shape: f32[2,4,256], index: 0, kind: input, shape index: {}]
  %s1 = inlined_call_operand.vmem [shape: s8[2,1,256], index: 1, kind: input, shape index: {}]
  %s2 = inlined_call_operand.vmem [shape: f32[2,1,4,128], index: 2, kind: output, shape index: {0}]
  %s3 = inlined_call_operand.vmem [shape: f32[2,1,4,128], index: 3, kind: output, shape index: {1}]
  %s4 = inlined_call_operand.vmem [shape: f32[2,1,4,128], index: 4, kind: output, shape index: {2}]
  %s5 = inlined_call_operand.vmem [shape: f32[2,1,4,128], index: 5, kind: output, shape index: {3}]
  %6 = xla_tuple %s2, %s3, %s4, %s5
  %s7 = sld [smem:[#allocation0]]
  $region69: #{combined_loss.1} parent=0
    _
  %s9 = ssub.s32 1, %s7
  %s10 = scalar_select 0, %s9, %s7
  loop: start=0, step=1, limit=4
  $region2: #{combined_loss.1} parent=0 // loop_pre_header
    _
  $region3: #{combined_loss.1} parent=0 // loop_header
    %s12 = sphi 0, %s16
    %p13 = scmp.ge.s32.totalorder %s12, 4
    %s19 = sphi 0, %s38
    %s20 = sphi 0, %s34
    %s21 = sphi 0, %s30
    %s22 = sphi 0, %s19
    %s23 = sphi 0, %s20
    %s24 = sphi 0, %s21
    %s25 = sphi 0, %s22
    %s26 = sphi 0, %s23
    %s27 = sphi 0, %s24
    %s45 = sphi 0, %s47
    %s48 = sphi 0, %s45
    %s49 = sphi 0, %s48
    %s65 = sphi 0, %s49
    %s75 = sphi 0, %s77
    %s78 = sphi 0, %s75
    %s79 = sphi 0, %s78
    %s95 = sphi 0, %s79
    %s103 = sphi 0, %s105
    %s106 = sphi 0, %s103
    %s107 = sphi 0, %s106
    %s123 = sphi 0, %s107
    %s131 = sphi 0, %s133
    %s134 = sphi 0, %s131
    %s135 = sphi 0, %s134
    %s151 = sphi 0, %s135
    %s159 = sphi 0, %s161
    %s162 = sphi 0, %s159
    %s163 = sphi 0, %s162
    %s179 = sphi 0, %s163
    %s187 = sphi 0, %s189
    %s190 = sphi 0, %s187
    %s191 = sphi 0, %s190
    %s207 = sphi 0, %s191
  $region4: #{combined_loss.1} parent=0 // loop_header_branch
    %15 = sbr.rel (%p13) target = $region8
  $region5: #{combined_loss.1} parent=0 // loop_body
    %s17 = ssub.s32 %s12, 1
    %s18 = ssub.s32 %s12, 2
    %s28 = sadd.s32 1, %s21
    %p29 = scmp.ge.s32.totalorder %s28, 1
    %s30 = scalar_select %p29, 0, %s28
    %s31 = sadd.s32 1, %s20
    %s32 = scalar_select %p29, %s31, %s20
    %p33 = scmp.ge.s32.totalorder %s32, 1
    %s34 = scalar_select %p33, 0, %s32
    %s35 = sadd.s32 1, %s19
    %s36 = scalar_select %p33, %s35, %s19
    %p37 = scmp.ge.s32.totalorder %s36, 2
    %s38 = scalar_select %p37, 0, %s36
    %s39 = sadd.s32 %s20, %s21
    %s40 = sadd.s32 %s34, %s30
    %s41 = ssub.s32 %s19, %s38
    %s42 = ssub.s32 %s39, %s40
    %s43 = sor.u32 %s41, %s42
    %p44 = scmp.eq.s32.totalorder %s43, 0
    %s46 = sadd.s32 %s45, 1
    %s47 = scalar_select %p44, %s45, %s46
    %p50 = pneg %p44
    %p51 = scmp.eq.s32.totalorder %s12, 1
    %p52 = por %p50, %p51
    %p53 = scmp.ne.s32.totalorder %s45, %s48
    %p54 = scmp.eq.s32.totalorder %s12, 0
    %p55 = por %p53, %p54
    %p56 = scmp.ne.s32.totalorder %s45, %s48
    %p57 = scmp.eq.s32.totalorder %s17, 1
    %p58 = por %p56, %p57
    %p59 = scmp.ne.s32.totalorder %s48, %s49
    %p60 = scmp.eq.s32.totalorder %s17, 0
    %p61 = por %p59, %p60
    %p62 = scmp.ne.s32.totalorder %s48, %s49
    %p63 = scmp.eq.s32.totalorder %s18, 1
    %p64 = por %p62, %p63
    %p66 = scmp.ne.s32.totalorder %s49, %s65
    %p67 = scmp.eq.s32.totalorder %s18, 0
    %p68 = por %p66, %p67
    %s69 = sadd.s32 %s20, %s21
    %s70 = sadd.s32 %s34, %s30
    %s71 = ssub.s32 %s19, %s38
    %s72 = ssub.s32 %s69, %s70
    %s73 = sor.u32 %s71, %s72
    %p74 = scmp.eq.s32.totalorder %s73, 0
    %s76 = sadd.s32 %s75, 1
    %s77 = scalar_select %p74, %s75, %s76
    %p80 = pneg %p74
    %p81 = scmp.eq.s32.totalorder %s12, 1
    %p82 = por %p80, %p81
    %p83 = scmp.ne.s32.totalorder %s75, %s78
    %p84 = scmp.eq.s32.totalorder %s12, 0
    %p85 = por %p83, %p84
    %p86 = scmp.ne.s32.totalorder %s75, %s78
    %p87 = scmp.eq.s32.totalorder %s17, 1
    %p88 = por %p86, %p87
    %p89 = scmp.ne.s32.totalorder %s78, %s79
    %p90 = scmp.eq.s32.totalorder %s17, 0
    %p91 = por %p89, %p90
    %p92 = scmp.ne.s32.totalorder %s78, %s79
    %p93 = scmp.eq.s32.totalorder %s18, 1
    %p94 = por %p92, %p93
    %p96 = scmp.ne.s32.totalorder %s79, %s95
    %p97 = scmp.eq.s32.totalorder %s18, 0
    %p98 = por %p96, %p97
    %s99 = ssub.s32 %s19, %s38
    %s100 = ssub.s32 %s20, %s34
    %s101 = sor.u32 %s99, %s100
    %p102 = scmp.eq.s32.totalorder %s101, 0
    %s104 = sadd.s32 %s103, 1
    %s105 = scalar_select %p102, %s103, %s104
    %p108 = pneg %p102
    %p109 = scmp.eq.s32.totalorder %s12, 1
    %p110 = por %p108, %p109
    %p111 = scmp.ne.s32.totalorder %s103, %s106
    %p112 = scmp.eq.s32.totalorder %s12, 0
    %p113 = por %p111, %p112
    %p114 = scmp.ne.s32.totalorder %s103, %s106
    %p115 = scmp.eq.s32.totalorder %s17, 1
    %p116 = por %p114, %p115
    %p117 = scmp.ne.s32.totalorder %s106, %s107
    %p118 = scmp.eq.s32.totalorder %s17, 0
    %p119 = por %p117, %p118
    %p120 = scmp.ne.s32.totalorder %s106, %s107
    %p121 = scmp.eq.s32.totalorder %s18, 1
    %p122 = por %p120, %p121
    %p124 = scmp.ne.s32.totalorder %s107, %s123
    %p125 = scmp.eq.s32.totalorder %s18, 0
    %p126 = por %p124, %p125
    %s127 = ssub.s32 %s19, %s38
    %s128 = ssub.s32 %s20, %s34
    %s129 = sor.u32 %s127, %s128
    %p130 = scmp.eq.s32.totalorder %s129, 0
    %s132 = sadd.s32 %s131, 1
    %s133 = scalar_select %p130, %s131, %s132
    %p136 = pneg %p130
    %p137 = scmp.eq.s32.totalorder %s12, 1
    %p138 = por %p136, %p137
    %p139 = scmp.ne.s32.totalorder %s131, %s134
    %p140 = scmp.eq.s32.totalorder %s12, 0
    %p141 = por %p139, %p140
    %p142 = scmp.ne.s32.totalorder %s131, %s134
    %p143 = scmp.eq.s32.totalorder %s17, 1
    %p144 = por %p142, %p143
    %p145 = scmp.ne.s32.totalorder %s134, %s135
    %p146 = scmp.eq.s32.totalorder %s17, 0
    %p147 = por %p145, %p146
    %p148 = scmp.ne.s32.totalorder %s134, %s135
    %p149 = scmp.eq.s32.totalorder %s18, 1
    %p150 = por %p148, %p149
    %p152 = scmp.ne.s32.totalorder %s135, %s151
    %p153 = scmp.eq.s32.totalorder %s18, 0
    %p154 = por %p152, %p153
    %s155 = ssub.s32 %s19, %s38
    %s156 = ssub.s32 %s20, %s34
    %s157 = sor.u32 %s155, %s156
    %p158 = scmp.eq.s32.totalorder %s157, 0
    %s160 = sadd.s32 %s159, 1
    %s161 = scalar_select %p158, %s159, %s160
    %p164 = pneg %p158
    %p165 = scmp.eq.s32.totalorder %s12, 1
    %p166 = por %p164, %p165
    %p167 = scmp.ne.s32.totalorder %s159, %s162
    %p168 = scmp.eq.s32.totalorder %s12, 0
    %p169 = por %p167, %p168
    %p170 = scmp.ne.s32.totalorder %s159, %s162
    %p171 = scmp.eq.s32.totalorder %s17, 1
    %p172 = por %p170, %p171
    %p173 = scmp.ne.s32.totalorder %s162, %s163
    %p174 = scmp.eq.s32.totalorder %s17, 0
    %p175 = por %p173, %p174
    %p176 = scmp.ne.s32.totalorder %s162, %s163
    %p177 = scmp.eq.s32.totalorder %s18, 1
    %p178 = por %p176, %p177
    %p180 = scmp.ne.s32.totalorder %s163, %s179
    %p181 = scmp.eq.s32.totalorder %s18, 0
    %p182 = por %p180, %p181
    %s183 = ssub.s32 %s19, %s38
    %s184 = ssub.s32 %s20, %s34
    %s185 = sor.u32 %s183, %s184
    %p186 = scmp.eq.s32.totalorder %s185, 0
    %s188 = sadd.s32 %s187, 1
    %s189 = scalar_select %p186, %s187, %s188
    %p192 = pneg %p186
    %p193 = scmp.eq.s32.totalorder %s12, 1
    %p194 = por %p192, %p193
    %p195 = scmp.ne.s32.totalorder %s187, %s190
    %p196 = scmp.eq.s32.totalorder %s12, 0
    %p197 = por %p195, %p196
    %p198 = scmp.ne.s32.totalorder %s187, %s190
    %p199 = scmp.eq.s32.totalorder %s17, 1
    %p200 = por %p198, %p199
    %p201 = scmp.ne.s32.totalorder %s190, %s191
    %p202 = scmp.eq.s32.totalorder %s17, 0
    %p203 = por %p201, %p202
    %p204 = scmp.ne.s32.totalorder %s190, %s191
    %p205 = scmp.eq.s32.totalorder %s18, 1
    %p206 = por %p204, %p205
    %p208 = scmp.ne.s32.totalorder %s191, %s207
    %p209 = scmp.eq.s32.totalorder %s18, 0
    %p210 = por %p208, %p209
    %p211 = scmp.le.s32.totalorder 1, %s12
    %p212 = scmp.lt.s32.totalorder %s12, 3
    %p213 = pnand %p211, %p212
    %p214 = pneg %p213
    // Predicated region
    $region9: #{combined_loss.1} parent=5 // pred_check
      _
    $region10: #{combined_loss.1} parent=5 // pred_check_branch
      %216 = sbr.rel (%p213) target = $region12
    $region11: #{combined_loss.1} parent=5 // pred_region
      %s217 = ssub.s32 %s12, 1
    $region12: #{combined_loss.1} parent=5 // pred_fallthru
      _
    %p218 = scmp.lt.s32.totalorder %s12, 2
    // Predicated region
    $region13: #{combined_loss.1} parent=5 // pred_check
      %p219 = pneg %p218
    $region14: #{combined_loss.1} parent=5 // pred_check_branch
      %221 = sbr.rel (%p219) target = $region16
    $region15: #{combined_loss.1} parent=5 // pred_region
      // Predicated region
      $region17: #{combined_loss.1} parent=15 // pred_check
        %p222 = pneg %p55
      $region18: #{combined_loss.1} parent=15 // pred_check_branch
        %224 = sbr.rel (%p222) target = $region20
      $region19: #{combined_loss.1} parent=15 // pred_region
        %s225 = sadd.s32 %s20, %s21
        %s226 = smul.u32 2, %s225
        %p227 = scmp.lt.s32.totalorder %s19, 1
        %s228 = scalar_select %p227, %s19, 1
        %p229 = scmp.lt.s32.totalorder %s226, 1
        %s230 = scalar_select %p229, %s226, 1
        %s231 = smul.addr %s228, 2
        %s232 = sadd.s32 %s230, %s231
        %s233 = smul.addr %s232, 4
        %s234 = scalar_lea.vmem %s0, %s233
        %s235 = sadd.s32 %s20, %s21
        %s236 = smul.u32 2, %s235
      $region20: #{combined_loss.1} parent=15 // pred_fallthru
        _
      // Predicated region
      $region21: #{combined_loss.1} parent=15 // pred_check
        %p237 = pneg %p85
      $region22: #{combined_loss.1} parent=15 // pred_check_branch
        %239 = sbr.rel (%p237) target = $region24
      $region23: #{combined_loss.1} parent=15 // pred_region
        %s240 = sadd.s32 %s20, %s21
        %s241 = smul.u32 2, %s240
        %p242 = scmp.lt.s32.totalorder %s19, 1
        %s243 = scalar_select %p242, %s19, 1
        %p244 = scmp.lt.s32.totalorder %s241, 1
        %s245 = scalar_select %p244, %s241, 1
        %s246 = smul.addr %s243, 2
        %s247 = sadd.s32 %s245, %s246
        %s248 = scalar_lea.vmem %s1, %s247
        %s249 = sadd.s32 %s20, %s21
        %s250 = smul.u32 2, %s249
      $region24: #{combined_loss.1} parent=15 // pred_fallthru
        _
    $region16: #{combined_loss.1} parent=5 // pred_fallthru
      _
    %p251 = scmp.le.s32.totalorder 1, %s12
    %p252 = scmp.lt.s32.totalorder %s12, 3
    %p253 = pnand %p251, %p252
    %p254 = pneg %p253
    // Predicated region
    $region25: #{combined_loss.1} parent=5 // pred_check
      _
    $region26: #{combined_loss.1} parent=5 // pred_check_branch
      %256 = sbr.rel (%p253) target = $region28
    $region27: #{combined_loss.1} parent=5 // pred_region
      %s257 = ssub.s32 %s12, 1
      %s258 = sadd.s32 %s23, %s24
      %s259 = smul.u32 2, %s258
      %p260 = scmp.lt.s32.totalorder %s22, 1
      %s261 = scalar_select %p260, %s22, 1
      %p262 = scmp.lt.s32.totalorder %s259, 1
      %s263 = scalar_select %p262, %s259, 1
      %s264 = smul.addr %s261, 2
      %s265 = sadd.s32 %s263, %s264
      %s266 = smul.addr %s265, 4
      %s267 = scalar_lea.vmem %s0, %s266
      %p268 = pneg %p61
      %p269 = pneg %p58
      %s270 = sadd.s32 %s23, %s24
      %s271 = smul.u32 2, %s270
      %p272 = scmp.lt.s32.totalorder %s22, 1
      %s273 = scalar_select %p272, %s22, 1
      %p274 = scmp.lt.s32.totalorder %s271, 1
      %s275 = scalar_select %p274, %s271, 1
      %s276 = smul.addr %s273, 2
      %s277 = sadd.s32 %s275, %s276
      %s278 = scalar_lea.vmem %s1, %s277
      %p279 = pneg %p91
      %p280 = pneg %p88
      %p281 = pneg %p119
      %p282 = pneg %p116
      %p283 = scmp.lt.s32.totalorder %s22, 1
      %s284 = scalar_select %p283, %s22, 1
      %p285 = scmp.lt.s32.totalorder %s23, 0
      %s286 = scalar_select %p285, %s23, 0
      %s287 = sadd.s32 %s286, %s284
      %s288 = smul.addr %s287, 4
      %s289 = scalar_lea.vmem %s2, %s288
      %p290 = pneg %p147
      %p291 = pneg %p144
      %p292 = scmp.lt.s32.totalorder %s22, 1
      %s293 = scalar_select %p292, %s22, 1
      %p294 = scmp.lt.s32.totalorder %s23, 0
      %s295 = scalar_select %p294, %s23, 0
      %s296 = sadd.s32 %s295, %s293
      %s297 = smul.addr %s296, 4
      %s298 = scalar_lea.vmem %s3, %s297
      %p299 = pneg %p175
      %p300 = pneg %p172
      %p301 = scmp.lt.s32.totalorder %s22, 1
      %s302 = scalar_select %p301, %s22, 1
      %p303 = scmp.lt.s32.totalorder %s23, 0
      %s304 = scalar_select %p303, %s23, 0
      %s305 = sadd.s32 %s304, %s302
      %s306 = smul.addr %s305, 4
      %s307 = scalar_lea.vmem %s4, %s306
      %p308 = pneg %p203
      %p309 = pneg %p200
      %p310 = scmp.lt.s32.totalorder %s22, 1
      %s311 = scalar_select %p310, %s22, 1
      %p312 = scmp.lt.s32.totalorder %s23, 0
      %s313 = scalar_select %p312, %s23, 0
      %s314 = sadd.s32 %s313, %s311
      %s315 = smul.addr %s314, 4
      %s316 = scalar_lea.vmem %s5, %s315
      %s317 = sadd.s32 %s23, %s24
      %s318 = smul.u32 2, %s317
      %p319 = scmp.lt.s32.totalorder %s22, 1
      %s320 = scalar_select %p319, %s22, 1
      %p321 = scmp.lt.s32.totalorder %s318, 1
      %s322 = scalar_select %p321, %s318, 1
      %s323 = smul.addr %s320, 2
      %s324 = sadd.s32 %s322, %s323
      %s325 = smul.addr %s324, 4
      %s326 = scalar_lea.vmem %s0, %s325
      %s327 = sadd.s32 %s23, %s24
      %s328 = smul.u32 2, %s327
      %s329 = sadd.s32 %s23, %s24
      %s330 = smul.u32 2, %s329
      %p331 = scmp.lt.s32.totalorder %s22, 1
      %s332 = scalar_select %p331, %s22, 1
      %p333 = scmp.lt.s32.totalorder %s330, 1
      %s334 = scalar_select %p333, %s330, 1
      %s335 = smul.addr %s332, 2
      %s336 = sadd.s32 %s334, %s335
      %s337 = scalar_lea.vmem %s1, %s336
      %s338 = sadd.s32 %s23, %s24
      %s339 = smul.u32 2, %s338
      %p340 = scmp.lt.s32.totalorder %s22, 1
      %s341 = scalar_select %p340, %s22, 1
      %p342 = scmp.lt.s32.totalorder %s23, 0
      %s343 = scalar_select %p342, %s23, 0
      %s344 = sadd.s32 %s343, %s341
      %s345 = smul.addr %s344, 4
      %s346 = scalar_lea.vmem %s2, %s345
      %p347 = scmp.lt.s32.totalorder %s22, 1
      %s348 = scalar_select %p347, %s22, 1
      %p349 = scmp.lt.s32.totalorder %s23, 0
      %s350 = scalar_select %p349, %s23, 0
      %s351 = sadd.s32 %s350, %s348
      %s352 = smul.addr %s351, 4
      %s353 = scalar_lea.vmem %s3, %s352
      %p354 = scmp.lt.s32.totalorder %s22, 1
      %s355 = scalar_select %p354, %s22, 1
      %p356 = scmp.lt.s32.totalorder %s23, 0
      %s357 = scalar_select %p356, %s23, 0
      %s358 = sadd.s32 %s357, %s355
      %s359 = smul.addr %s358, 4
      %s360 = scalar_lea.vmem %s4, %s359
      %p361 = scmp.lt.s32.totalorder %s22, 1
      %s362 = scalar_select %p361, %s22, 1
      %p363 = scmp.lt.s32.totalorder %s23, 0
      %s364 = scalar_select %p363, %s23, 0
      %s365 = sadd.s32 %s364, %s362
      %s366 = smul.addr %s365, 4
      %s367 = scalar_lea.vmem %s5, %s366
      %p368 = scmp.eq.s32.totalorder %s24, 0
      // Predicated region
      $region29: #{combined_loss.1} parent=27 // pred_check
        %p369 = pneg %p368
      $region30: #{combined_loss.1} parent=27 // pred_check_branch
        %371 = sbr.rel (%p369) target = $region32
      $region31: #{combined_loss.1} parent=27 // pred_region
        %372 = vst [vmem:[%s346] sm:$0xf] 0.0
        %373 = vst [vmem:[%s353] sm:$0xf] 0.0
        %374 = vst [vmem:[%s360] sm:$0xf] 0.0
        %375 = vst [vmem:[%s367] sm:$0xf] 0.0
      $region32: #{combined_loss.1} parent=27 // pred_fallthru
        _
      %v376 = vlaneseq
      %v377 = vshrl.u32 %v376, 7
      %v378 = vld [vmem:[%s326] sm:$0xff]
      %v379 = vld [vmem:[%s337] sm:$0x3]
      %v380 = vunpack.c.0.s8 %v379
      %v382 = vcombine.high %v378, %v378
      %vm384 = vcmask 1043456
      %v385 = vsel %vm384, %v378, -inf
      %v386 = vrot.slane %v385, 4
      %v387 = vmax.f32 %v385, %v386
      %v388 = vrot.slane %v387, 2
      %v389 = vmax.f32 %v387, %v388
      %v390 = vrot.slane %v389, 1
      %v391 = vmax.f32 %v389, %v390
      %v392 = vsel %vm384, %v382, -inf
      %v393 = vrot.slane %v392, 4
      %v394 = vmax.f32 %v392, %v393
      %v395 = vrot.slane %v394, 2
      %v396 = vmax.f32 %v394, %v395
      %v397 = vrot.slane %v396, 1
      %v398 = vmax.f32 %v396, %v397
      %v401 = vcombine.low %v391, %v398
      %v403 = vsub.f32 %v378, %v401
      %v404 = vmul.f32 %v403, 1.442695
      %v405 = vpow.pop %v404
      %v407 = vcombine.high %v405, %v405
      %v409 = vsel %vm384, %v405, 0.0
      %v410 = vrot.slane %v409, 4
      %v411 = vadd.f32 %v409, %v410
      %v412 = vrot.slane %v411, 2
      %v413 = vadd.f32 %v411, %v412
      %v414 = vrot.slane %v413, 1
      %v415 = vadd.f32 %v413, %v414
      %v416 = vsel %vm384, %v407, 0.0
      %v417 = vrot.slane %v416, 4
      %v418 = vadd.f32 %v416, %v417
      %v419 = vrot.slane %v418, 2
      %v420 = vadd.f32 %v418, %v419
      %v421 = vrot.slane %v420, 1
      %v422 = vadd.f32 %v420, %v421
      %v423 = vrcp.pop %v415
      %v424 = vrcp.pop %v422
      %v425 = vmul.f32 %v415, %v423
      %v426 = vmul.f32 %v422, %v424
      %v427 = vsub.f32 2.0, %v425
      %v428 = vsub.f32 2.0, %v426
      %v429 = vmul.f32 %v423, %v427
      %v430 = vmul.f32 %v424, %v428
      %v433 = vcombine.low %v429, %v430
      %v435 = vmul.f32 %v405, %v433
      %v436 = vlog2.pop %v415
      %v437 = vmul.f32 %v436, 0.6931472
      %v438 = vlog2.pop %v422
      %v439 = vmul.f32 %v438, 0.6931472
      %v440 = vadd.f32 %v391, %v437
      %v441 = vadd.f32 %v398, %v439
      %v442 = vlaneseq
      %v443 = vshrl.u32 %v442, 7
      %v444 = vsub.s32 0, %v443
      %v445 = vrot.slane %v380, %v444
      %v446 = vlaneseq
      %v447 = vshrl.u32 %v446, 7
      %v448 = vsub.s32 4, %v447
      %v449 = vrot.slane %v380, %v448
      %v450 = vlaneseq
      %v451 = vshrl.u32 %v450, 7
      %v452 = vsub.s32 0, %v451
      %v453 = vrot.slane %v445, %v452
      %v454 = vlaneseq
      %v455 = vshrl.u32 %v454, 7
      %v456 = vsub.s32 0, %v455
      %v457 = vrot.slane %v449, %v456
      %vm458 = vcmp.eq.s32.totalorder %v377, %v453
      %vm459 = vcmp.eq.s32.totalorder %v377, %v457
      %v460 = vsel %vm458, 1, 0
      %v461 = vsel %vm459, 1, 0
      %v462 = vcvt.s32.f32 %v460
      %v463 = vcvt.s32.f32 %v461
      %v464 = vsel %vm458, %v378, 0.0
      %v465 = vsel %vm459, %v382, 0.0
      %v466 = vsel %vm384, %v464, 0.0
      %v467 = vrot.slane %v466, 4
      %v468 = vadd.f32 %v466, %v467
      %v469 = vrot.slane %v468, 2
      %v470 = vadd.f32 %v468, %v469
      %v471 = vrot.slane %v470, 1
      %v472 = vadd.f32 %v470, %v471
      %v473 = vsel %vm384, %v465, 0.0
      %v474 = vrot.slane %v473, 4
      %v475 = vadd.f32 %v473, %v474
      %v476 = vrot.slane %v475, 2
      %v477 = vadd.f32 %v475, %v476
      %v478 = vrot.slane %v477, 1
      %v479 = vadd.f32 %v477, %v478
      %v480 = vsub.f32 %v440, %v472
      %v481 = vsub.f32 %v441, %v479
      %v482 = vmul.f32 %v480, %v462
      %v483 = vmul.f32 %v481, %v463
      %v486 = vcombine.low %v462, %v463
      %v488 = vmul.f32 %v435, %v486
      %v489 = vadd.f32 %v482, 0.0
      %v490 = vadd.f32 %v488, 0.0
      %v491 = vadd.f32 %v435, 0.0
      %v492 = vadd.f32 %v462, 0.0
      %v493 = vadd.f32 %v489, %v483
      %v495 = vrot.slane %v488, 4
      %v497 = vadd.f32 %v490, %v495
      %v499 = vrot.slane %v435, 4
      %v501 = vadd.f32 %v491, %v499
      %v502 = vadd.f32 %v492, %v463
      %v503 = vld [vmem:[%s346] sm:$0xf]
      %v504 = vadd.f32 %v503, %v493
      %505 = vst [vmem:[%s346] sm:$0xf] %v504
      %v506 = vld [vmem:[%s353] sm:$0xf]
      %v507 = vadd.f32 %v506, %v497
      %508 = vst [vmem:[%s353] sm:$0xf] %v507
      %v509 = vld [vmem:[%s360] sm:$0xf]
      %v510 = vadd.f32 %v509, %v501
      %511 = vst [vmem:[%s360] sm:$0xf] %v510
      %v512 = vld [vmem:[%s367] sm:$0xf]
      %v513 = vadd.f32 %v512, %v502
      %514 = vst [vmem:[%s367] sm:$0xf] %v513
      %p515 = scmp.lt.s32.totalorder %s22, 1
      %s516 = scalar_select %p515, %s22, 1
      %p517 = scmp.lt.s32.totalorder %s23, 0
      %s518 = scalar_select %p517, %s23, 0
      %s519 = sadd.s32 %s518, %s516
      %s520 = smul.addr %s519, 4
      %s521 = scalar_lea.vmem %s2, %s520
      %p522 = scmp.lt.s32.totalorder %s22, 1
      %s523 = scalar_select %p522, %s22, 1
      %p524 = scmp.lt.s32.totalorder %s23, 0
      %s525 = scalar_select %p524, %s23, 0
      %s526 = sadd.s32 %s525, %s523
      %s527 = smul.addr %s526, 4
      %s528 = scalar_lea.vmem %s3, %s527
      %p529 = scmp.lt.s32.totalorder %s22, 1
      %s530 = scalar_select %p529, %s22, 1
      %p531 = scmp.lt.s32.totalorder %s23, 0
      %s532 = scalar_select %p531, %s23, 0
      %s533 = sadd.s32 %s532, %s530
      %s534 = smul.addr %s533, 4
      %s535 = scalar_lea.vmem %s4, %s534
      %p536 = scmp.lt.s32.totalorder %s22, 1
      %s537 = scalar_select %p536, %s22, 1
      %p538 = scmp.lt.s32.totalorder %s23, 0
      %s539 = scalar_select %p538, %s23, 0
      %s540 = sadd.s32 %s539, %s537
      %s541 = smul.addr %s540, 4
      %s542 = scalar_lea.vmem %s5, %s541
      // Predicated region
      $region33: #{combined_loss.1} parent=27 // pred_check
        %p543 = pneg %p116
      $region34: #{combined_loss.1} parent=27 // pred_check_branch
        %545 = sbr.rel (%p543) target = $region36
      $region35: #{combined_loss.1} parent=27 // pred_region
        _
      $region36: #{combined_loss.1} parent=27 // pred_fallthru
        _
      // Predicated region
      $region37: #{combined_loss.1} parent=27 // pred_check
        %p546 = pneg %p144
      $region38: #{combined_loss.1} parent=27 // pred_check_branch
        %548 = sbr.rel (%p546) target = $region40
      $region39: #{combined_loss.1} parent=27 // pred_region
        _
      $region40: #{combined_loss.1} parent=27 // pred_fallthru
        _
      // Predicated region
      $region41: #{combined_loss.1} parent=27 // pred_check
        %p549 = pneg %p172
      $region42: #{combined_loss.1} parent=27 // pred_check_branch
        %551 = sbr.rel (%p549) target = $region44
      $region43: #{combined_loss.1} parent=27 // pred_region
        _
      $region44: #{combined_loss.1} parent=27 // pred_fallthru
        _
      // Predicated region
      $region45: #{combined_loss.1} parent=27 // pred_check
        %p552 = pneg %p200
      $region46: #{combined_loss.1} parent=27 // pred_check_branch
        %554 = sbr.rel (%p552) target = $region48
      $region47: #{combined_loss.1} parent=27 // pred_region
        _
      $region48: #{combined_loss.1} parent=27 // pred_fallthru
        _
    $region28: #{combined_loss.1} parent=5 // pred_fallthru
      _
    %p555 = scmp.le.s32.totalorder 2, %s12
    // Predicated region
    $region49: #{combined_loss.1} parent=5 // pred_check
      %p556 = pneg %p555
    $region50: #{combined_loss.1} parent=5 // pred_check_branch
      %558 = sbr.rel (%p556) target = $region52
    $region51: #{combined_loss.1} parent=5 // pred_region
      %s559 = ssub.s32 %s12, 2
      // Predicated region
      $region53: #{combined_loss.1} parent=51 // pred_check
        %p560 = pneg %p122
      $region54: #{combined_loss.1} parent=51 // pred_check_branch
        %562 = sbr.rel (%p560) target = $region56
      $region55: #{combined_loss.1} parent=51 // pred_region
        %p563 = scmp.lt.s32.totalorder %s25, 1
        %s564 = scalar_select %p563, %s25, 1
        %p565 = scmp.lt.s32.totalorder %s26, 0
        %s566 = scalar_select %p565, %s26, 0
        %s567 = sadd.s32 %s566, %s564
        %s568 = smul.addr %s567, 4
        %s569 = scalar_lea.vmem %s2, %s568
      $region56: #{combined_loss.1} parent=51 // pred_fallthru
        _
      // Predicated region
      $region57: #{combined_loss.1} parent=51 // pred_check
        %p570 = pneg %p150
      $region58: #{combined_loss.1} parent=51 // pred_check_branch
        %572 = sbr.rel (%p570) target = $region60
      $region59: #{combined_loss.1} parent=51 // pred_region
        %p573 = scmp.lt.s32.totalorder %s25, 1
        %s574 = scalar_select %p573, %s25, 1
        %p575 = scmp.lt.s32.totalorder %s26, 0
        %s576 = scalar_select %p575, %s26, 0
        %s577 = sadd.s32 %s576, %s574
        %s578 = smul.addr %s577, 4
        %s579 = scalar_lea.vmem %s3, %s578
      $region60: #{combined_loss.1} parent=51 // pred_fallthru
        _
      // Predicated region
      $region61: #{combined_loss.1} parent=51 // pred_check
        %p580 = pneg %p178
      $region62: #{combined_loss.1} parent=51 // pred_check_branch
        %582 = sbr.rel (%p580) target = $region64
      $region63: #{combined_loss.1} parent=51 // pred_region
        %p583 = scmp.lt.s32.totalorder %s25, 1
        %s584 = scalar_select %p583, %s25, 1
        %p585 = scmp.lt.s32.totalorder %s26, 0
        %s586 = scalar_select %p585, %s26, 0
        %s587 = sadd.s32 %s586, %s584
        %s588 = smul.addr %s587, 4
        %s589 = scalar_lea.vmem %s4, %s588
      $region64: #{combined_loss.1} parent=51 // pred_fallthru
        _
      // Predicated region
      $region65: #{combined_loss.1} parent=51 // pred_check
        %p590 = pneg %p206
      $region66: #{combined_loss.1} parent=51 // pred_check_branch
        %592 = sbr.rel (%p590) target = $region68
      $region67: #{combined_loss.1} parent=51 // pred_region
        %p593 = scmp.lt.s32.totalorder %s25, 1
        %s594 = scalar_select %p593, %s25, 1
        %p595 = scmp.lt.s32.totalorder %s26, 0
        %s596 = scalar_select %p595, %s26, 0
        %s597 = sadd.s32 %s596, %s594
        %s598 = smul.addr %s597, 4
        %s599 = scalar_lea.vmem %s5, %s598
      $region68: #{combined_loss.1} parent=51 // pred_fallthru
        _
    $region52: #{combined_loss.1} parent=5 // pred_fallthru
      _
  $region6: #{combined_loss.1} parent=0 // loop_footer
    %s16 = sadd.s32 1, %s12
  $region7: #{combined_loss.1} parent=0 // loop_footer_branch
    %11 = sbr.rel target = $region3
  $region8: #{combined_loss.1} parent=0 // loop_exit
    _

</llo_original>
